<compile_context>
chip_gen: v5e
topology: v5e:2x2
jax: 0.10.0
libtpu: 0.0.40
codegen_flags: <defaults>
</compile_context>

<pallas_src>
import functools

import jax
import jax.numpy as jnp
from jax.experimental import pallas as pl
from jax.experimental.pallas import tpu as pltpu

IN_FEATURES = 80
OUT_FEATURES = 64
OTHER = 1
CONST_VAR0 = 6


def linear_kernel(x_ref, wt_ref, b_ref, o_ref):
    # Whole operands resident in VMEM; single MXU pass + exact-shape bias add.
    o_ref[...] = (
        jnp.dot(x_ref[...], wt_ref[...], preferred_element_type=jnp.float32)
        + b_ref[...]
    )


def pallas_linear(x, wt, b2d):
    n = x.shape[0]
    vmem = pl.BlockSpec(memory_space=pltpu.MemorySpace.VMEM)
    cost = pl.CostEstimate(
        flops=2 * n * IN_FEATURES * OUT_FEATURES,
        bytes_accessed=4 * (n * IN_FEATURES
                            + IN_FEATURES * OUT_FEATURES
                            + OUT_FEATURES
                            + n * OUT_FEATURES),
        transcendentals=0,
    )
    # No grid: one invocation, full arrays in VMEM, no pipeline scaffolding.
    return pl.pallas_call(
        linear_kernel,
        out_shape=jax.ShapeDtypeStruct((n, OUT_FEATURES), jnp.float32),
        in_specs=[vmem, vmem, vmem],
        out_specs=vmem,
        cost_estimate=cost,
    )(x, wt, b2d)


@functools.partial(jax.jit, static_argnames=("other",))
def model_forward(x, wt, b2d, other=OTHER):
    """Returns (v5, y): v5 is the module's scalar output (59), y = linear(x)."""
    y = pallas_linear(x, wt, b2d)          # Pallas hot path, (1, 64)

    # v1 = linear(x).size(1) is static shape info -> compile-time constant.
    v1 = y.shape[1]
    v3 = v1 - CONST_VAR0
    v5 = v3 + other
    return jnp.int32(v5), y


if __name__ == "__main__":
    key = jax.random.PRNGKey(0)
    kx, kw, kb = jax.random.split(key, 3)

    # Deterministic param init (nn.Linear-style uniform(-1/sqrt(fan_in), +)).
    bound = 1.0 / (IN_FEATURES ** 0.5)
    w = jax.random.uniform(kw, (OUT_FEATURES, IN_FEATURES), jnp.float32, -bound, bound)
    b = jax.random.uniform(kb, (OUT_FEATURES,), jnp.float32, -bound, bound)

    # One-time setup: pre-transpose the weight, pre-shape the bias to (1, 64).
    wt = w.T                     # (80, 64)
    b2d = b[None, :]             # (1, 64)

    x = jax.random.normal(kx, (1, IN_FEATURES), jnp.float32)

    out, y = model_forward(x, wt, b2d)
    out = jax.block_until_ready(out)
    y = jax.block_until_ready(y)

    # Cross-check the Pallas linear against plain XLA.
    y_ref = x @ w.T + b[None, :]
    assert jnp.allclose(y, y_ref, atol=1e-5, rtol=1e-5), "linear mismatch"

    expected = OUT_FEATURES - CONST_VAR0 + OTHER  # 59
    assert int(out) == expected, f"got {int(out)}, expected {expected}"
    print("KERNEL_OK")
</pallas_src>

<mosaic_0001>
module attributes {stable_mosaic.version = 11 : i64} {
  func.func @linear_kernel(%arg0: memref<1x80xf32, #tpu.memory_space<vmem>>, %arg1: memref<80x64xf32, #tpu.memory_space<vmem>>, %arg2: memref<1x64xf32, #tpu.memory_space<vmem>>, %arg3: memref<1x64xf32, #tpu.memory_space<vmem>>) attributes {dimension_semantics = [], scalar_prefetch = 0 : i64, scratch_operands = 0 : i64, tpu.core_type = #tpu.core_type<tc>} {
    %c0 = arith.constant 0 : index
    %c0_0 = arith.constant 0 : index
    %0 = vector.load %arg0[%c0, %c0_0] : memref<1x80xf32, #tpu.memory_space<vmem>>, vector<1x80xf32>
    %c0_1 = arith.constant 0 : index
    %c0_2 = arith.constant 0 : index
    %1 = vector.load %arg1[%c0_1, %c0_2] : memref<80x64xf32, #tpu.memory_space<vmem>>, vector<80x64xf32>
    %cst = arith.constant dense<0.000000e+00> : vector<1x64xf32>
    %2 = tpu.matmul %0, %1, %cst {dimension_numbers = #tpu.dot_dimension_numbers<[1], [0], [0], [1], [0, 0, 1, 1], [], []>} : vector<1x80xf32>, vector<80x64xf32>, vector<1x64xf32> -> vector<1x64xf32>
    %c0_3 = arith.constant 0 : index
    %c0_4 = arith.constant 0 : index
    %3 = vector.load %arg2[%c0_3, %c0_4] : memref<1x64xf32, #tpu.memory_space<vmem>>, vector<1x64xf32>
    %4 = arith.addf %2, %3 : vector<1x64xf32>
    %c0_5 = arith.constant 0 : index
    %c0_6 = arith.constant 0 : index
    %5 = vector.load %arg3[%c0_5, %c0_6] : memref<1x64xf32, #tpu.memory_space<vmem>>, vector<1x64xf32>
    tpu.vector_store %arg3[%c0_5, %c0_6], %4 {strides = array<i32>} : memref<1x64xf32, #tpu.memory_space<vmem>>, vector<1x64xf32>,
    return
  }
}

</mosaic_0001>

<llo_original>
// kernel: model_forward.1
$region0: #{model_forward.1}
  #allocation0 [shape = 'u32[]', space=smem, size = 0x4, offset = 0x4, fixed_abs, tag = 'smem constant byte address 0x4 - core index']
  #allocation1 [shape = 'u32[72,128]{1,0:T(1,128)}', space=vmem, size = 0x9000, scoped, tag = 'internal scratch']
  %s0 = inlined_call_operand.vmem [shape: f32[1,80], index: 0, kind: input, shape index: {}]
  %s1 = inlined_call_operand.vmem [shape: f32[80,64], index: 1, kind: input, shape index: {}]
  %s2 = inlined_call_operand.vmem [shape: f32[1,64], index: 2, kind: input, shape index: {}]
  %s3 = inlined_call_operand.hbm [shape: f32[1,64], index: 3, kind: output, shape index: {}]
  %s4 = sld [smem:[#allocation0]]
  $region22: #{model_forward.1} parent=0
    _
  %s6 = ssub.s32 1, %s4
  %s7 = scalar_select 0, %s6, %s4
  $region1: #{model_forward.1} parent=0
    #allocation2 [shape = 'u8[512]{0}', space=vmem, size = 0x400, scoped, tag = 'output window, operand 0, single buffered']
    #allocation3 [shape = 's32[1]{0}', space=sflag, size = 0x4, scoped, tag = 'scoped memory for model_forward.1']
    %8 = vsyncpa [#allocation3], 0
    // Predicated region
    $region2: #{model_forward.1} parent=1 // pred_check
      _
    $region3: #{model_forward.1} parent=1 // pred_check_branch
      %10 = sbr.rel (0) target = $region5
    $region4: #{model_forward.1} parent=1 // pred_region
      _
    $region5: #{model_forward.1} parent=1 // pred_fallthru
      _
    // Predicated region
    $region6: #{model_forward.1} parent=1 // pred_check
      _
    $region7: #{model_forward.1} parent=1 // pred_check_branch
      %12 = sbr.rel (0) target = $region9
    $region8: #{model_forward.1} parent=1 // pred_region
      _
    $region9: #{model_forward.1} parent=1 // pred_fallthru
      _
    // Predicated region
    $region10: #{model_forward.1} parent=1 // pred_check
      _
    $region11: #{model_forward.1} parent=1 // pred_check_branch
      %14 = sbr.rel (0) target = $region13
    $region12: #{model_forward.1} parent=1 // pred_region
      _
    $region13: #{model_forward.1} parent=1 // pred_fallthru
      _
    %v15 = vld [vmem:[%s0] sm:$0x1]
    %v16 = vld [vmem:[%s1] sm:$0xff]
    %v17 = vld [vmem:[%s1 + $0x8] sm:$0xff]
    %v18 = vld [vmem:[%s1 + $0x10] sm:$0xff]
    %v19 = vld [vmem:[%s1 + $0x18] sm:$0xff]
    %v20 = vld [vmem:[%s1 + $0x20] sm:$0xff]
    %v21 = vld [vmem:[%s1 + $0x28] sm:$0xff]
    %v22 = vld [vmem:[%s1 + $0x30] sm:$0xff]
    %v23 = vld [vmem:[%s1 + $0x38] sm:$0xff]
    %v24 = vld [vmem:[%s1 + $0x40] sm:$0xff]
    %v25 = vld [vmem:[%s1 + $0x48] sm:$0xff]
    %v26 = vld [vmem:[%s2] sm:$0x1]
    %vm27 = vcmask 654336
    %v29 = vsel %vm27, %v15, 0
    %31 = vmatpush.msra.mxu0 0.0
    %32 = vmatpush.msra.mxu0 0.0
    %33 = vmatpush.msra.mxu0 0.0
    %34 = vmatpush.msra.mxu0 0.0
    %35 = vmatpush.msra.mxu0 0.0
    %36 = vmatpush.msra.mxu0 0.0
    %37 = vmatpush.msra.mxu0 %v25
    %38 = vmatpush.msra.mxu0 %v24
    %39 = vmatpush.msra.mxu0 %v23
    %40 = vmatpush.msra.mxu0 %v22
    %41 = vmatpush.msra.mxu0 %v21
    %42 = vmatpush.msra.mxu0 %v20
    %43 = vmatpush.msra.mxu0 %v19
    %44 = vmatpush.msra.mxu0 %v18
    %45 = vmatpush.msra.mxu0 %v17
    %46 = vmatpush.msra.mxu0 %v16
    %47 = vmatmul.f32.gmra.mxu0 %v29
    %v48 = vpop.f32.mrf.mxu0
    %v49 = vadd.f32 %v26, %v48
    %50 = vdwg.mxu0
    %vm51 = vcmask 516096
    %52 = vst.msk [vmem:[#allocation2] sm:$0x1] %vm51, %v49
    // Predicated region
    $region14: #{model_forward.1} parent=1 // pred_check
      _
    $region15: #{model_forward.1} parent=1 // pred_check_branch
      %54 = sbr.rel (0) target = $region17
    $region16: #{model_forward.1} parent=1 // pred_region
      %56 = vsyncadd [#allocation3], 0
      %s58 = sshll.u32 [#allocation2], 4
      %s59 = int_to_ptr.vmem [resolvable:$true] %s58
      %s60 = sshll.u32 %s3, 4
      %s61 = int_to_ptr.hbm [resolvable:$true] %s60
      %63 = dma.vmem_to_hbm [thread:$0]  %s59, 16, %s61, [#allocation3]
    $region17: #{model_forward.1} parent=1 // pred_fallthru
      _
    // Predicated region
    $region18: #{model_forward.1} parent=1 // pred_check
      _
    $region19: #{model_forward.1} parent=1 // pred_check_branch
      %65 = sbr.rel (0) target = $region21
    $region20: #{model_forward.1} parent=1 // pred_region
      %67 = dma.done [#allocation3], 16
    $region21: #{model_forward.1} parent=1 // pred_fallthru
      _
    %68 = vsyncpa [#allocation3], 1

</llo_original>
